<compile_context>
chip_gen: v7x
topology: tpu7x:2x2x1
jax: 0.10.0
libtpu: 0.0.40
codegen_flags: <defaults>
</compile_context>

<pallas_src>
import jax
import jax.numpy as jnp
from jax.experimental import pallas as pl
from jax.experimental.pallas import tpu as pltpu


def _pick_hw_tile(hw, c, bytes_per_elem=4, target_bytes=2 << 20):
    """Largest lane tile T that divides HW, is a multiple of 128, and keeps one
    (C, T) block under ~2 MiB. Falls back to the full extent if HW % 128 != 0."""
    if hw % 128 != 0:
        return hw
    best = 128
    t = 128
    while t <= hw:
        if hw % t == 0 and c * t * bytes_per_elem <= target_bytes:
            best = t
        t += 128
    return best


def scse_forward(x_nchw, w1, b1, w2, b2, ws, bs):
    """x_nchw: (N, C, H, W) float32.
    Weights in matmul form (from the PyTorch 1x1 convs):
      w1: (C, Cr), b1: (Cr,), w2: (Cr, C), b2: (C,), ws: (C, 1), bs: scalar ()."""
    N, C, H, W = x_nchw.shape
    HW = H * W

    # NCHW-native flatten: HW on the lane axis, C on sublanes. No transpose.
    x = x_nchw.reshape(N, C, HW).astype(jnp.float32)

    T = _pick_hw_tile(HW, C)
    grid_hw = HW // T
    inv_hw = 1.0 / float(HW)

    # ---------------- pass 1: per-image, per-channel mean (tiled reduction) -----
    def mean_kernel(x_ref, m_ref, acc_ref):
        t = pl.program_id(1)

        @pl.when(t == 0)
        def _():
            acc_ref[...] = jnp.zeros_like(acc_ref)

        # lane (XLU) reduce of the (C, T) tile -> (C, 1) partial sum
        acc_ref[...] += jnp.sum(x_ref[0], axis=-1, keepdims=True)

        @pl.when(t == pl.num_programs(1) - 1)
        def _():
            m_ref[0] = acc_ref[...] * inv_hw

    mean = pl.pallas_call(
        mean_kernel,
        out_shape=jax.ShapeDtypeStruct((N, C, 1), jnp.float32),
        grid_spec=pltpu.PrefetchScalarGridSpec(
            num_scalar_prefetch=0,
            grid=(N, grid_hw),
            in_specs=[pl.BlockSpec((1, C, T), lambda n, t: (n, 0, t))],
            out_specs=pl.BlockSpec((1, C, 1), lambda n, t: (n, 0, 0)),
            scratch_shapes=[pltpu.VMEM((C, 1), jnp.float32)],
        ),
        compiler_params=pltpu.CompilerParams(
            dimension_semantics=("parallel", "arbitrary")),
    )(x)  # (N, C, 1)

    # ------------- tiny cSE MLP in plain JAX (negligible flops, per review) -----
    m = mean[:, :, 0]                                   # (N, C)
    h = jnp.maximum(m @ w1 + b1, 0.0)                   # (N, Cr)
    cse = jax.nn.sigmoid(h @ w2 + b2)                   # (N, C)
    cse = cse[:, :, None]                               # (N, C, 1)

    # ---------------- pass 2: streaming gate-apply kernel -----------------------
    def apply_kernel(x_ref, cse_ref, ws_ref, bs_ref, o_ref):
        xb = x_ref[0]                                   # (C, T)
        # sSE: VPU broadcast-mul + sublane reduce (C on sublanes) -> (1, T).
        # Avoids a degenerate (HW, C) x (C, 1) MXU matmul with lane-width-1 output.
        sse = jax.nn.sigmoid(
            jnp.sum(xb * ws_ref[...], axis=0, keepdims=True) + bs_ref[0])
        # Fused gates: x*cSE + x*sSE == x * (cSE + sSE)
        o_ref[0] = xb * (cse_ref[0] + sse)

    out = pl.pallas_call(
        apply_kernel,
        out_shape=jax.ShapeDtypeStruct((N, C, HW), jnp.float32),
        grid_spec=pltpu.PrefetchScalarGridSpec(
            num_scalar_prefetch=0,
            grid=(N, grid_hw),
            in_specs=[
                pl.BlockSpec((1, C, T), lambda n, t: (n, 0, t)),   # x tile
                pl.BlockSpec((1, C, 1), lambda n, t: (n, 0, 0)),   # cSE gate
                pl.BlockSpec((C, 1), lambda n, t: (0, 0)),         # sSE weights
                pl.BlockSpec(memory_space=pltpu.MemorySpace.SMEM), # sSE bias scalar
            ],
            out_specs=pl.BlockSpec((1, C, T), lambda n, t: (n, 0, t)),
        ),
        compiler_params=pltpu.CompilerParams(
            dimension_semantics=("parallel", "parallel")),
    )(x, cse, ws, jnp.reshape(bs, (1,)).astype(jnp.float32))

    return out.reshape(N, C, H, W)


def scse_reference(x, w1, b1, w2, b2, ws, bs):
    """Pure-JAX reference matching the PyTorch semantics (sanity check)."""
    mean = jnp.mean(x, axis=(2, 3))                           # (N, C)
    h = jnp.maximum(mean @ w1 + b1, 0.0)                      # (N, Cr)
    cse = jax.nn.sigmoid(h @ w2 + b2)[:, :, None, None]       # (N, C, 1, 1)
    sse = jax.nn.sigmoid(
        jnp.einsum("nchw,c->nhw", x, ws[:, 0]) + bs)[:, None, :, :]  # (N,1,H,W)
    return x * cse + x * sse


if __name__ == "__main__":
    # Small shapes consistent with the module: batch=2, channels=4, spatial=16x16
    N, C, H, W = 2, 4, 16, 16
    reduction = 2
    Cr = C // reduction

    key = jax.random.PRNGKey(0)
    kx, k1, kb1, k2, kb2, ks, kbs = jax.random.split(key, 7)

    x = jax.random.normal(kx, (N, C, H, W), dtype=jnp.float32)

    # Synthetic parameters (matmul form of the PyTorch 1x1 convs):
    #   cSE conv1: (Cr, C, 1, 1) + (Cr,)  -> (C, Cr), (Cr,)
    #   cSE conv2: (C, Cr, 1, 1) + (C,)   -> (Cr, C), (C,)
    #   sSE conv : (1, C, 1, 1)  + (1,)   -> (C, 1),  scalar
    w1 = 0.5 * jax.random.normal(k1, (C, Cr), dtype=jnp.float32)
    b1 = 0.1 * jax.random.normal(kb1, (Cr,), dtype=jnp.float32)
    w2 = 0.5 * jax.random.normal(k2, (Cr, C), dtype=jnp.float32)
    b2 = 0.1 * jax.random.normal(kb2, (C,), dtype=jnp.float32)
    ws = 0.5 * jax.random.normal(ks, (C, 1), dtype=jnp.float32)
    bs = 0.1 * jax.random.normal(kbs, (), dtype=jnp.float32)

    out = jax.block_until_ready(scse_forward(x, w1, b1, w2, b2, ws, bs))

    ref = scse_reference(x, w1, b1, w2, b2, ws, bs)
    assert out.shape == (N, C, H, W)
    assert jnp.allclose(out, ref, atol=1e-5, rtol=1e-5)

    print("KERNEL_OK")
</pallas_src>

<mosaic_0001>
module attributes {stable_mosaic.version = 11 : i64} {
  func.func @mean_kernel(%arg0: i32, %arg1: i32, %arg2: memref<1x4x256xf32, #tpu.memory_space<vmem>>, %arg3: memref<1x4x1xf32, #tpu.memory_space<vmem>>, %arg4: memref<4x1xf32, #tpu.memory_space<vmem>>) attributes {dimension_semantics = [#tpu.dimension_semantics<parallel>, #tpu.dimension_semantics<arbitrary>], iteration_bounds = array<i64: 2, 1>, scalar_prefetch = 0 : i64, scratch_operands = 1 : i64, tpu.core_type = #tpu.core_type<tc>, window_params = [{transform_indices = @transform_0, window_bounds = array<i64: 1, 4, 256>}, {transform_indices = @transform_1, window_bounds = array<i64: 1, 4, 1>}]} {
    %c0_i32 = arith.constant 0 : i32
    %0 = arith.cmpi eq, %arg1, %c0_i32 : i32
    %1 = arith.extui %0 : i1 to i32
    %c0_i32_0 = arith.constant 0 : i32
    %2 = arith.cmpi ne, %1, %c0_i32_0 : i32
    scf.if %2 {
      %cst_9 = arith.constant 0.000000e+00 : f32
      %13 = vector.broadcast %cst_9 : f32 to vector<4x1xf32>
      %c0_10 = arith.constant 0 : index
      %c0_11 = arith.constant 0 : index
      %14 = vector.load %arg4[%c0_10, %c0_11] : memref<4x1xf32, #tpu.memory_space<vmem>>, vector<4x1xf32>
      tpu.vector_store %arg4[%c0_10, %c0_11], %13 {strides = array<i32>} : memref<4x1xf32, #tpu.memory_space<vmem>>, vector<4x1xf32>,
    } else {
    }
    %c0 = arith.constant 0 : index
    %c0_1 = arith.constant 0 : index
    %3 = vector.load %arg4[%c0, %c0_1] : memref<4x1xf32, #tpu.memory_space<vmem>>, vector<4x1xf32>
    %c0_2 = arith.constant 0 : index
    %c0_3 = arith.constant 0 : index
    %c0_4 = arith.constant 0 : index
    %4 = vector.load %arg2[%c0_2, %c0_3, %c0_4] : memref<1x4x256xf32, #tpu.memory_space<vmem>>, vector<1x4x256xf32>
    %5 = vector.shape_cast %4 : vector<1x4x256xf32> to vector<4x256xf32>
    %cst = arith.constant dense<0.000000e+00> : vector<4xf32>
    %6 = vector.multi_reduction <add>, %5, %cst [1] : vector<4x256xf32> to vector<4xf32>
    %7 = vector.shape_cast %6 : vector<4xf32> to vector<4x1xf32>
    %8 = arith.addf %3, %7 : vector<4x1xf32>
    %c0_5 = arith.constant 0 : index
    %c0_6 = arith.constant 0 : index
    %9 = vector.load %arg4[%c0_5, %c0_6] : memref<4x1xf32, #tpu.memory_space<vmem>>, vector<4x1xf32>
    tpu.vector_store %arg4[%c0_5, %c0_6], %8 {strides = array<i32>} : memref<4x1xf32, #tpu.memory_space<vmem>>, vector<4x1xf32>,
    %c0_i32_7 = arith.constant 0 : i32
    %10 = arith.cmpi eq, %arg1, %c0_i32_7 : i32
    %11 = arith.extui %10 : i1 to i32
    %c0_i32_8 = arith.constant 0 : i32
    %12 = arith.cmpi ne, %11, %c0_i32_8 : i32
    scf.if %12 {
      %c0_9 = arith.constant 0 : index
      %c0_10 = arith.constant 0 : index
      %13 = vector.load %arg4[%c0_9, %c0_10] : memref<4x1xf32, #tpu.memory_space<vmem>>, vector<4x1xf32>
      %cst_11 = arith.constant 3.906250e-03 : f32
      %14 = vector.broadcast %cst_11 : f32 to vector<4x1xf32>
      %15 = arith.mulf %13, %14 : vector<4x1xf32>
      %c0_12 = arith.constant 0 : index
      %c0_13 = arith.constant 0 : index
      %c0_14 = arith.constant 0 : index
      %16 = vector.load %arg3[%c0_12, %c0_13, %c0_14] : memref<1x4x1xf32, #tpu.memory_space<vmem>>, vector<1x4x1xf32>
      %17 = vector.shape_cast %16 : vector<1x4x1xf32> to vector<4x1xf32>
      %18 = vector.shape_cast %15 : vector<4x1xf32> to vector<1x4x1xf32>
      tpu.vector_store %arg3[%c0_12, %c0_13, %c0_14], %18 {strides = array<i32>} : memref<1x4x1xf32, #tpu.memory_space<vmem>>, vector<1x4x1xf32>,
    } else {
    }
    return
  }
  func.func @transform_0(%arg0: i32, %arg1: i32) -> (i32, i32, i32) {
    %c0_i32 = arith.constant 0 : i32
    %c0_i32_0 = arith.constant 0 : i32
    return %arg0, %c0_i32, %arg1 : i32, i32, i32
  }
  func.func @transform_1(%arg0: i32, %arg1: i32) -> (i32, i32, i32) {
    %c0_i32 = arith.constant 0 : i32
    %c0_i32_0 = arith.constant 0 : i32
    %c0_i32_1 = arith.constant 0 : i32
    return %arg0, %c0_i32, %c0_i32_0 : i32, i32, i32
  }
}

</mosaic_0001>

<llo_original>
// kernel: tpu_custom_call.1
$region0: #{tpu_custom_call.1}
  #allocation0 [shape = 'u32[]', space=smem, size = 0x4, offset = 0x4, fixed_abs, tag = 'smem constant byte address 0x4 - core index']
  #allocation1 [shape = 'u32[144,128]{1,0:T(1,128)}', space=vmem, size = 0x12000, scoped, tag = 'internal scratch']
  #allocation2 [shape = 'f32[4,1]{1,0:T(4,128)}', space=vmem, size = 0x800, scoped, tag = 'scratch operand']
  %s0 = inlined_call_operand.hbm [shape: f32[2,4,256], index: 0, kind: input, shape index: {}]
  %s1 = inlined_call_operand.vmem [shape: f32[2,4,1], index: 1, kind: output, shape index: {}]
  %s2 = sld [smem:[#allocation0]]
  $region49: #{tpu_custom_call.1} parent=0
    _
  %s4 = ssub.s32 1, %s2
  %s5 = scalar_select 0, %s4, %s2
  $region1: #{tpu_custom_call.1} parent=0
    #allocation3 [shape = 'u8[8192]{0}', space=vmem, size = 0x2000, scoped, tag = 'input window, operand 0']
    #allocation4 [shape = 's32[2]{0}', space=sflag, size = 0x8, scoped, tag = 'scoped memory for tpu_custom_call.1']
    %6 = vsyncpa [#allocation4], 0
    %s7 = scalar_lea.sflag [#allocation4], 1
    %8 = vsyncpa %s7, 0
    loop: start=0, step=1, limit=4
    $region2: #{tpu_custom_call.1} parent=1 // loop_pre_header
      _
    $region3: #{tpu_custom_call.1} parent=1 // loop_header
      %s10 = sphi 0, %s14
      %p11 = scmp.ge.s32.totalorder %s10, 4
      %s17 = sphi 0, %s29
      %s18 = sphi 0, %s25
      %s19 = sphi 0, %s17
      %s20 = sphi 0, %s18
      %s21 = sphi 0, %s19
      %s22 = sphi 0, %s20
      %s34 = sphi 0, %s36
      %s37 = sphi 0, %s34
      %s38 = sphi 0, %s37
      %s54 = sphi 0, %s38
      %s60 = sphi 0, %s62
      %s63 = sphi 0, %s60
      %s64 = sphi 0, %s63
      %s80 = sphi 0, %s64
    $region4: #{tpu_custom_call.1} parent=1 // loop_header_branch
      %13 = sbr.rel (%p11) target = $region8
    $region5: #{tpu_custom_call.1} parent=1 // loop_body
      %s15 = ssub.s32 %s10, 1
      %s16 = ssub.s32 %s10, 2
      %s23 = sadd.s32 1, %s18
      %p24 = scmp.ge.s32.totalorder %s23, 1
      %s25 = scalar_select %p24, 0, %s23
      %s26 = sadd.s32 1, %s17
      %s27 = scalar_select %p24, %s26, %s17
      %p28 = scmp.ge.s32.totalorder %s27, 2
      %s29 = scalar_select %p28, 0, %s27
      %s30 = ssub.s32 %s17, %s29
      %s31 = ssub.s32 %s18, %s25
      %s32 = sor.u32 %s30, %s31
      %p33 = scmp.eq.s32.totalorder %s32, 0
      %s35 = sadd.s32 %s34, 1
      %s36 = scalar_select %p33, %s34, %s35
      %p39 = pneg %p33
      %p40 = scmp.eq.s32.totalorder %s10, 1
      %p41 = por %p39, %p40
      %p42 = scmp.ne.s32.totalorder %s34, %s37
      %p43 = scmp.eq.s32.totalorder %s10, 0
      %p44 = por %p42, %p43
      %p45 = scmp.ne.s32.totalorder %s34, %s37
      %p46 = scmp.eq.s32.totalorder %s15, 1
      %p47 = por %p45, %p46
      %p48 = scmp.ne.s32.totalorder %s37, %s38
      %p49 = scmp.eq.s32.totalorder %s15, 0
      %p50 = por %p48, %p49
      %p51 = scmp.ne.s32.totalorder %s37, %s38
      %p52 = scmp.eq.s32.totalorder %s16, 1
      %p53 = por %p51, %p52
      %p55 = scmp.ne.s32.totalorder %s38, %s54
      %p56 = scmp.eq.s32.totalorder %s16, 0
      %p57 = por %p55, %p56
      %s58 = ssub.s32 %s17, %s29
      %p59 = scmp.eq.s32.totalorder %s58, 0
      %s61 = sadd.s32 %s60, 1
      %s62 = scalar_select %p59, %s60, %s61
      %p65 = pneg %p59
      %p66 = scmp.eq.s32.totalorder %s10, 1
      %p67 = por %p65, %p66
      %p68 = scmp.ne.s32.totalorder %s60, %s63
      %p69 = scmp.eq.s32.totalorder %s10, 0
      %p70 = por %p68, %p69
      %p71 = scmp.ne.s32.totalorder %s60, %s63
      %p72 = scmp.eq.s32.totalorder %s15, 1
      %p73 = por %p71, %p72
      %p74 = scmp.ne.s32.totalorder %s63, %s64
      %p75 = scmp.eq.s32.totalorder %s15, 0
      %p76 = por %p74, %p75
      %p77 = scmp.ne.s32.totalorder %s63, %s64
      %p78 = scmp.eq.s32.totalorder %s16, 1
      %p79 = por %p77, %p78
      %p81 = scmp.ne.s32.totalorder %s64, %s80
      %p82 = scmp.eq.s32.totalorder %s16, 0
      %p83 = por %p81, %p82
      %p84 = scmp.le.s32.totalorder 1, %s10
      %p85 = scmp.lt.s32.totalorder %s10, 3
      %p86 = pnand %p84, %p85
      %p87 = pneg %p86
      // Predicated region
      $region9: #{tpu_custom_call.1} parent=5 // pred_check
        _
      $region10: #{tpu_custom_call.1} parent=5 // pred_check_branch
        %89 = sbr.rel (%p86) target = $region12
      $region11: #{tpu_custom_call.1} parent=5 // pred_region
        %s90 = ssub.s32 %s10, 1
      $region12: #{tpu_custom_call.1} parent=5 // pred_fallthru
        _
      %p91 = scmp.lt.s32.totalorder %s10, 2
      // Predicated region
      $region13: #{tpu_custom_call.1} parent=5 // pred_check
        %p92 = pneg %p91
      $region14: #{tpu_custom_call.1} parent=5 // pred_check_branch
        %94 = sbr.rel (%p92) target = $region16
      $region15: #{tpu_custom_call.1} parent=5 // pred_region
        // Predicated region
        $region17: #{tpu_custom_call.1} parent=15 // pred_check
          %p95 = pneg %p44
        $region18: #{tpu_custom_call.1} parent=15 // pred_check_branch
          %97 = sbr.rel (%p95) target = $region20
        $region19: #{tpu_custom_call.1} parent=15 // pred_region
          %s98 = sand.u32 %s34, 1
          %s99 = scalar_lea.sflag [#allocation4], %s98
          %s100 = sand.u32 %s34, 1
          %s101 = smul.addr %s100, 8
          %s102 = scalar_lea.vmem [#allocation3], %s101
          %s103 = smul.u32 2, %s18
          %s105 = ssub.s32 128, 128
          %106 = vsyncadd %s99, %s105
          %s107 = smul.addr %s17, 2
          %s108 = sadd.s32 %s103, %s107
          %s109 = smul.addr %s108, 64
          %s110 = scalar_lea.hbm %s0, %s109
          %s112 = sshll.u32 %s102, 4
          %s113 = int_to_ptr.vmem [resolvable:$true] %s112
          %115 = dma.hbm_to_vmem [thread:$0]  %s110, 128, %s113, %s99
        $region20: #{tpu_custom_call.1} parent=15 // pred_fallthru
          _
      $region16: #{tpu_custom_call.1} parent=5 // pred_fallthru
        _
      %p116 = scmp.le.s32.totalorder 1, %s10
      %p117 = scmp.lt.s32.totalorder %s10, 3
      %p118 = pnand %p116, %p117
      %p119 = pneg %p118
      // Predicated region
      $region21: #{tpu_custom_call.1} parent=5 // pred_check
        _
      $region22: #{tpu_custom_call.1} parent=5 // pred_check_branch
        %121 = sbr.rel (%p118) target = $region24
      $region23: #{tpu_custom_call.1} parent=5 // pred_region
        %s122 = ssub.s32 %s10, 1
        %s123 = sand.u32 %s37, 1
        %s124 = scalar_lea.sflag [#allocation4], %s123
        %s125 = sand.u32 %s37, 1
        %s126 = smul.addr %s125, 8
        %s127 = scalar_lea.vmem [#allocation3], %s126
        // Predicated region
        $region25: #{tpu_custom_call.1} parent=23 // pred_check
          %p128 = pneg %p50
        $region26: #{tpu_custom_call.1} parent=23 // pred_check_branch
          %130 = sbr.rel (%p128) target = $region28
        $region27: #{tpu_custom_call.1} parent=23 // pred_region
          %131 = dma.done %s124, 128
        $region28: #{tpu_custom_call.1} parent=23 // pred_fallthru
          _
        %s132 = sand.u32 %s37, 1
        %s133 = scalar_lea.sflag [#allocation4], %s132
        %s134 = sand.u32 %s37, 1
        %s135 = smul.addr %s134, 8
        %s136 = scalar_lea.vmem [#allocation3], %s135
        %p137 = pneg %p50
        %p138 = pneg %p47
        %p139 = pneg %p76
        %p140 = pneg %p73
        %p141 = scmp.lt.s32.totalorder %s19, 1
        %s142 = scalar_select %p141, %s19, 1
        %s143 = smul.addr %s142, 4
        %s144 = scalar_lea.vmem %s1, %s143
        %s145 = smul.u32 2, %s20
        %p146 = scmp.lt.s32.totalorder %s19, 1
        %s147 = scalar_select %p146, %s19, 1
        %s148 = smul.addr %s147, 4
        %s149 = scalar_lea.vmem %s1, %s148
        %p150 = scmp.eq.s32.totalorder %s20, 0
        // Predicated region
        $region29: #{tpu_custom_call.1} parent=23 // pred_check
          %p151 = pneg %p150
        $region30: #{tpu_custom_call.1} parent=23 // pred_check_branch
          %153 = sbr.rel (%p151) target = $region32
        $region31: #{tpu_custom_call.1} parent=23 // pred_region
          %vm154 = vcmask 3072
          %155 = vst.msk [vmem:[#allocation2] sm:$0xf] %vm154, 0.0
        $region32: #{tpu_custom_call.1} parent=23 // pred_fallthru
          _
        %v156 = vld [vmem:[#allocation2] sm:$0xf]
        %v157 = vld [vmem:[%s127] sm:$0xff]
        %v159 = vcombine.high %v157, %v157
        %vm161 = vcmask 1043456
        %v162 = vsel %vm161, %v157, 0.0
        %v163 = vsel %vm161, %v159, 0.0
        %v164 = vadd.f32 %v162, %v163
        %165 = vadd.xlane.f32.xlu0 %v164
        %v166 = vpop.xlane.xlu0 %165
        %v167 = vadd.f32 %v156, %v166
        %vm168 = vcmask 3072
        %169 = vst.msk [vmem:[#allocation2] sm:$0xf] %vm168, %v167
        // Predicated region
        $region33: #{tpu_custom_call.1} parent=23 // pred_check
          %p170 = pneg %p150
        $region34: #{tpu_custom_call.1} parent=23 // pred_check_branch
          %172 = sbr.rel (%p170) target = $region36
        $region35: #{tpu_custom_call.1} parent=23 // pred_region
          %v173 = vld [vmem:[#allocation2] sm:$0xf]
          %v174 = vmul.f32 %v173, 0.00390625
          %175 = vst.msk [vmem:[%s149] sm:$0xf] %vm168, %v174
        $region36: #{tpu_custom_call.1} parent=23 // pred_fallthru
          _
        %p176 = scmp.lt.s32.totalorder %s19, 1
        %s177 = scalar_select %p176, %s19, 1
        %s178 = smul.addr %s177, 4
        %s179 = scalar_lea.vmem %s1, %s178
        // Predicated region
        $region37: #{tpu_custom_call.1} parent=23 // pred_check
          %p180 = pneg %p73
        $region38: #{tpu_custom_call.1} parent=23 // pred_check_branch
          %182 = sbr.rel (%p180) target = $region40
        $region39: #{tpu_custom_call.1} parent=23 // pred_region
          _
        $region40: #{tpu_custom_call.1} parent=23 // pred_fallthru
          _
      $region24: #{tpu_custom_call.1} parent=5 // pred_fallthru
        _
      %p183 = scmp.le.s32.totalorder 2, %s10
      // Predicated region
      $region41: #{tpu_custom_call.1} parent=5 // pred_check
        %p184 = pneg %p183
      $region42: #{tpu_custom_call.1} parent=5 // pred_check_branch
        %186 = sbr.rel (%p184) target = $region44
      $region43: #{tpu_custom_call.1} parent=5 // pred_region
        %s187 = ssub.s32 %s10, 2
        // Predicated region
        $region45: #{tpu_custom_call.1} parent=43 // pred_check
          %p188 = pneg %p79
        $region46: #{tpu_custom_call.1} parent=43 // pred_check_branch
          %190 = sbr.rel (%p188) target = $region48
        $region47: #{tpu_custom_call.1} parent=43 // pred_region
          %p191 = scmp.lt.s32.totalorder %s21, 1
          %s192 = scalar_select %p191, %s21, 1
          %s193 = smul.addr %s192, 4
          %s194 = scalar_lea.vmem %s1, %s193
        $region48: #{tpu_custom_call.1} parent=43 // pred_fallthru
          _
      $region44: #{tpu_custom_call.1} parent=5 // pred_fallthru
        _
    $region6: #{tpu_custom_call.1} parent=1 // loop_footer
      %s14 = sadd.s32 1, %s10
    $region7: #{tpu_custom_call.1} parent=1 // loop_footer_branch
      %9 = sbr.rel target = $region3
    $region8: #{tpu_custom_call.1} parent=1 // loop_exit
      _
    %195 = vsyncpa [#allocation4], 1
    %s196 = scalar_lea.sflag [#allocation4], 1
    %197 = vsyncpa %s196, 1

</llo_original>
